<compile_context>
chip_gen: v5e
topology: v5e:2x2
jax: 0.10.0
libtpu: 0.0.40
codegen_flags: <defaults>
</compile_context>

<pallas_src>
import functools
import math

import numpy as np
import jax
import jax.numpy as jnp
from jax import lax
from jax.experimental import pallas as pl
from jax.experimental.pallas import tpu as pltpu


def _round_up(a, b):
    return (a + b - 1) // b * b


def _syncnet_kernel(x_ref, w_ref, bias_ref, wexp_ref, bcl_ref, out_ref, ys_ref, *,
                    nf, C, fw, Lc, pool, pad_l, lp_pad):
    """Fused conv + zero-pad + maxpool + relu + linear for one batch tile.

    x_ref   : (C, TILE_N, lp_ext)   VMEM  channel-leading input; Xp (1st-pad signal) starts
                                          at lane pad_l, zeros elsewhere
    w_ref   : (nf*C*fw,)            SMEM  flattened conv weights, index f*C*fw + c*fw + w
    bias_ref: (nf,)                 SMEM  conv bias
    wexp_ref: (nf, lp_pad, NCLS_P)  VMEM  classifier weight expanded to padded-pool lanes
                                          (nonzero rows only at lane j*pool)
    bcl_ref : (1, NCLS_P)           VMEM  classifier bias (zero-padded to 128 lanes)
    out_ref : (TILE_N, NCLS_P)      VMEM  lane-dense logits tile
    ys_ref  : (TILE_N, lp_ext)      VMEM  scratch row used as the shift source for pooling
    """
    tile_n = x_ref.shape[1]
    lane = lax.broadcasted_iota(jnp.int32, (tile_n, lp_pad), 1)
    interior = (lane >= pad_l) & (lane < pad_l + Lc)     # valid conv-output region

    # Scratch is uninitialized VMEM; zero it so lanes beyond lp_pad stay finite (they feed
    # the zero rows of wexp, and 0 * NaN would otherwise poison the matmul).
    ys_ref[...] = jnp.zeros(ys_ref.shape, ys_ref.dtype)

    logits = jnp.zeros((tile_n, out_ref.shape[1]), jnp.float32)

    for f in range(nf):                                   # nf is small (default 1)
        # ---- "valid" cross-correlation accumulated directly in padded output coords ----
        # y[l] = sum_{c,w} W[f,c,w] * Xp[c, l - pad_l + w] = sum_{c,w} W * x_ref[c, l + w]
        def conv_channel(c, acc):
            base = (f * C + c) * fw
            for w in range(fw):                           # short static tap loop
                acc = acc + w_ref[base + w] * x_ref[c, :, pl.ds(w, lp_pad)]
            return acc

        y = lax.fori_loop(0, C, conv_channel,
                          jnp.zeros((tile_n, lp_pad), jnp.float32))

        # bias must be added BEFORE the zero-pad/maxpool (max(x+b) vs pad-0 comparison);
        # the halo (and lanes beyond Lp2) is exactly 0, matching torch F.pad.
        y = jnp.where(interior, y + bias_ref[f], 0.0)

        # ---- max pool: log-tree sliding-window max of width `pool` --------------------
        # win_k[l] = max(y[l .. l+k-1]); only lanes l = j*pool (j < n_pool) are consumed
        # downstream, and those windows never read past lp_pad.
        ys_ref[:, pl.ds(0, lp_pad)] = y                   # scratch holds win_1
        m = y
        k = 1
        while k < pool:
            if 2 * k <= pool:
                shift, new_k = k, 2 * k
            else:                                         # overlapping combine for non-pow2
                shift, new_k = pool - k, pool
            m = jnp.maximum(m, ys_ref[:, pl.ds(shift, lp_pad)])
            k = new_k
            if k < pool:
                ys_ref[:, pl.ds(0, lp_pad)] = m           # stage win_k for the next round

        feat = jnp.maximum(m, 0.0)                        # ReLU

        # ---- classifier on the MXU: window selection folded into wexp's rows ----------
        logits = logits + jnp.dot(feat, wexp_ref[f],
                                  preferred_element_type=jnp.float32)

    out_ref[...] = (logits + bcl_ref[...]).astype(out_ref.dtype)


def init_params(key, cfg):
    nc_, nf, fw = cfg["num_channels"], cfg["num_filters"], cfg["filter_width"]
    cl_Wy = int(math.ceil(float(cfg["input_size"]) / float(cfg["pool_size"])) * nf)
    n_classes = cfg["num_classes"]
    ks = jax.random.split(key, 7)
    if fw % 2 == 0:
        t = np.reshape(np.arange(-(fw // 2), fw // 2), (1, fw, 1, 1)).astype(np.float32)
    else:
        t = np.reshape(np.arange(-((fw - 1) // 2), (fw - 1) // 2 + 1),
                       (1, fw, 1, 1)).astype(np.float32)
    bound = 1.0 / math.sqrt(cl_Wy)
    return dict(
        b=jax.random.uniform(ks[0], (1, 1, nc_, nf), jnp.float32, -0.05, 0.05),
        bias=jax.random.uniform(ks[1], (nf,), jnp.float32, -0.1, 0.1),
        omega=jax.random.uniform(ks[2], (1, 1, 1, nf), jnp.float32, 0.0, 1.0),
        t=jnp.asarray(t),
        phi_ini=0.05 * jax.random.normal(ks[3], (1, 1, nc_, nf), jnp.float32),
        beta=jax.random.uniform(ks[4], (1, 1, 1, nf), jnp.float32, 0.0, 0.05),
        cl_w=jax.random.uniform(ks[5], (n_classes, cl_Wy), jnp.float32, -bound, bound),
        cl_b=jax.random.uniform(ks[6], (n_classes,), jnp.float32, -bound, bound),
    )


def syncnet_forward(X, params, cfg):
    nc_, nf = cfg["num_channels"], cfg["num_filters"]
    fw, pool = cfg["filter_width"], cfg["pool_size"]
    L_cfg, ncls = cfg["input_size"], cfg["num_classes"]

    if X.ndim == 3:
        X = X[:, :, None, :]                      # torch: X.unsqueeze(2) -> (N, C, 1, L)
    N, C, _, L = X.shape
    assert C == nc_ and L == L_cfg
    assert fw <= 128 and pool <= 128              # one 128-lane halo covers all slice offsets

    # ---- build the oscillatory conv filter (plain JAX glue: parameter setup) ----
    t = params["t"]                                                  # (1, fw, 1, 1)
    W = (params["b"] * jnp.cos(t * params["omega"] + params["phi_ini"])
         * jnp.exp(-jnp.square(t) * params["beta"])).astype(jnp.float32)
    W = W.reshape(nf, nc_, 1, fw)          # identical to torch .view (row-major reinterpret)
    w_flat = W.reshape(-1)                 # flat index = f*nc*fw + c*fw + w

    # ---- padding identical to the torch module ----
    P = fw - 2
    pad_l, pad_r = (P // 2, P // 2 + 1) if P % 2 == 0 else (P // 2, P // 2)
    Lc = L + pad_l + pad_r - fw + 1        # 'valid' conv output length after 1st F.pad
    Lp2 = Lc + pad_l + pad_r               # length after 2nd F.pad (pool input)
    n_pool = Lp2 // pool                   # MaxPool2d floor semantics
    cl_Wy = int(math.ceil(float(L_cfg) / float(pool)) * nf)
    assert cl_Wy == nf * n_pool

    # ---- TPU-friendly padded sizes: lane dim multiple of 128, batch tile multiple of 8 ----
    lp_pad = _round_up(Lp2, 128)
    lp_ext = lp_pad + 128                  # halo so every static lane slice stays in range
    ncls_pad = _round_up(ncls, 128)
    tile_n = min(128, _round_up(N, 8))
    n_pad = _round_up(N, tile_n)

    # ---- channel-leading, lane-extended input: (C, N_pad, lp_ext) ----
    # The 1st-padded signal Xp lives at lane offset pad_l, i.e. raw x starts at 2*pad_l;
    # everything else (halo, batch padding, lane padding) is exactly zero.
    x = jnp.transpose(X[:, :, 0, :].astype(jnp.float32), (1, 0, 2))   # (C, N, L)
    x_full = jnp.zeros((C, n_pad, lp_ext), jnp.float32)
    x_full = lax.dynamic_update_slice(x_full, x, (0, 0, 2 * pad_l))

    # ---- classifier weight expanded to padded-pool lane coordinates ----
    # feature index f*n_pool + j lives at lane j*pool of filter f's pooled row.
    wclT = params["cl_w"].T.astype(jnp.float32).reshape(nf, n_pool, ncls)
    wexp = jnp.zeros((nf, lp_pad, ncls_pad), jnp.float32)
    wexp = wexp.at[:, jnp.arange(n_pool) * pool, :ncls].set(wclT)
    bcl = jnp.zeros((1, ncls_pad), jnp.float32).at[0, :ncls].set(
        params["cl_b"].astype(jnp.float32))

    kernel = functools.partial(_syncnet_kernel, nf=nf, C=C, fw=fw, Lc=Lc,
                               pool=pool, pad_l=pad_l, lp_pad=lp_pad)

    grid = (n_pad // tile_n,)
    x_block_bytes = C * tile_n * lp_ext * 4
    wexp_bytes = nf * lp_pad * ncls_pad * 4
    out_block_bytes = tile_n * ncls_pad * 4
    scratch_bytes = tile_n * lp_ext * 4
    vmem_limit = int(2 * (x_block_bytes + wexp_bytes + out_block_bytes + ncls_pad * 4)
                     + scratch_bytes + (8 << 20))
    vmem_limit = min(vmem_limit, 100 * 1024 * 1024)

    out = pl.pallas_call(
        kernel,
        out_shape=jax.ShapeDtypeStruct((n_pad, ncls_pad), jnp.float32),
        grid=grid,
        in_specs=[
            pl.BlockSpec((C, tile_n, lp_ext), lambda i: (0, i, 0)),           # x tile
            pl.BlockSpec(memory_space=pltpu.MemorySpace.SMEM),                # conv weights
            pl.BlockSpec(memory_space=pltpu.MemorySpace.SMEM),                # conv bias
            pl.BlockSpec((nf, lp_pad, ncls_pad), lambda i: (0, 0, 0)),        # expanded cl_w
            pl.BlockSpec((1, ncls_pad), lambda i: (0, 0)),                    # cl_b
        ],
        out_specs=pl.BlockSpec((tile_n, ncls_pad), lambda i: (i, 0)),
        scratch_shapes=[pltpu.VMEM((tile_n, lp_ext), jnp.float32)],
        compiler_params=pltpu.CompilerParams(
            dimension_semantics=("parallel",),
            vmem_limit_bytes=vmem_limit),
    )(x_full, w_flat, params["bias"].astype(jnp.float32), wexp, bcl)

    # TODO(synk): torch forward also re-binds self.beta = clamp(beta, min=0); that is a
    # training-side parameter mutation with no effect on the returned value, so omitted.
    return jnp.squeeze(out[:N, :ncls])     # matches .squeeze() (no-op for N>1, classes>1)


def syncnet_reference(X, params, cfg):
    """Pure-JAX reference mirroring the torch forward (for verification only)."""
    nc_, nf = cfg["num_channels"], cfg["num_filters"]
    fw, pool = cfg["filter_width"], cfg["pool_size"]
    if X.ndim == 3:
        X = X[:, :, None, :]
    t = params["t"]
    W = (params["b"] * jnp.cos(t * params["omega"] + params["phi_ini"])
         * jnp.exp(-jnp.square(t) * params["beta"])).astype(jnp.float32)
    W = W.reshape(nf, nc_, 1, fw)
    P = fw - 2
    pad = (P // 2, P // 2 + 1) if P % 2 == 0 else (P // 2, P // 2)
    Xp = jnp.pad(X.astype(jnp.float32), ((0, 0), (0, 0), (0, 0), pad))
    res = lax.conv_general_dilated(Xp, W, (1, 1), "VALID",
                                   dimension_numbers=("NCHW", "OIHW", "NCHW"))
    res = res + params["bias"].reshape(1, nf, 1, 1)
    resp = jnp.pad(res, ((0, 0), (0, 0), (0, 0), pad))
    n_pool = resp.shape[-1] // pool
    pooled = jnp.max(resp[..., : n_pool * pool].reshape(res.shape[0], nf, 1, n_pool, pool),
                     axis=-1)
    cl_Wy = int(math.ceil(float(cfg["input_size"]) / float(pool)) * nf)
    flat = pooled.reshape(-1, cl_Wy)
    logits = jnp.maximum(flat, 0.0) @ params["cl_w"].T + params["cl_b"]
    return jnp.squeeze(logits)


if __name__ == "__main__":
    # Small, forward-consistent config (filter_width even -> same t/padding branch as default).
    cfg = dict(num_channels=4, input_size=160, num_classes=2,
               num_filters=2, filter_width=8, pool_size=16)
    key = jax.random.PRNGKey(0)
    pkey, xkey = jax.random.split(key)
    params = init_params(pkey, cfg)

    X = jax.random.normal(xkey, (2, cfg["num_channels"], cfg["input_size"]), jnp.float32)

    out = jax.block_until_ready(syncnet_forward(X, params, cfg))
    ref = jax.block_until_ready(syncnet_reference(X, params, cfg))

    assert out.shape == (2, cfg["num_classes"]), out.shape
    if not np.allclose(np.asarray(out), np.asarray(ref), rtol=1e-4, atol=1e-4):
        raise AssertionError(f"kernel/reference mismatch:\n{out}\nvs\n{ref}")
    print("KERNEL_OK")
</pallas_src>

<mosaic_0001>
module attributes {stable_mosaic.version = 11 : i64} {
  func.func @_syncnet_kernel(%arg0: i32, %arg1: memref<4x8x384xf32, #tpu.memory_space<vmem>>, %arg2: memref<64xf32, #tpu.memory_space<smem>>, %arg3: memref<2xf32, #tpu.memory_space<smem>>, %arg4: memref<2x256x128xf32, #tpu.memory_space<vmem>>, %arg5: memref<1x128xf32, #tpu.memory_space<vmem>>, %arg6: memref<8x128xf32, #tpu.memory_space<vmem>>, %arg7: memref<8x384xf32, #tpu.memory_space<vmem>>) attributes {dimension_semantics = [#tpu.dimension_semantics<parallel>], iteration_bounds = array<i64: 1>, scalar_prefetch = 0 : i64, scratch_operands = 1 : i64, tpu.core_type = #tpu.core_type<tc>, window_params = [{transform_indices = @transform_0, window_bounds = array<i64: 4, 8, 384>}, {transform_indices = @transform_1, window_bounds = array<i64: 64>}, {transform_indices = @transform_2, window_bounds = array<i64: 2>}, {pipeline_mode = #tpu.pipeline_mode<synchronous>, transform_indices = @transform_3, window_bounds = array<i64: 2, 256, 128>}, {pipeline_mode = #tpu.pipeline_mode<synchronous>, transform_indices = @transform_4, window_bounds = array<i64: 1, 128>}, {transform_indices = @transform_5, window_bounds = array<i64: 8, 128>}]} {
    %0 = tpu.iota {dimensions = array<i32: 1>} : vector<8x256xi32>
    %c3_i32 = arith.constant 3 : i32
    %1 = vector.broadcast %c3_i32 : i32 to vector<8x256xi32>
    %2 = arith.cmpi sge, %0, %1 : vector<8x256xi32>
    %c163_i32 = arith.constant 163 : i32
    %3 = vector.broadcast %c163_i32 : i32 to vector<8x256xi32>
    %4 = arith.cmpi slt, %0, %3 : vector<8x256xi32>
    %5 = arith.andi %2, %4 : vector<8x256xi1>
    %cst = arith.constant 0.000000e+00 : f32
    %6 = vector.broadcast %cst : f32 to vector<8x384xf32>
    %c0 = arith.constant 0 : index
    %c0_0 = arith.constant 0 : index
    %7 = vector.load %arg7[%c0, %c0_0] : memref<8x384xf32, #tpu.memory_space<vmem>>, vector<8x384xf32>
    tpu.vector_store %arg7[%c0, %c0_0], %6 {strides = array<i32>} : memref<8x384xf32, #tpu.memory_space<vmem>>, vector<8x384xf32>,
    %cst_1 = arith.constant 0.000000e+00 : f32
    %8 = vector.broadcast %cst_1 : f32 to vector<8x128xf32>
    %cst_2 = arith.constant 0.000000e+00 : f32
    %9 = vector.broadcast %cst_2 : f32 to vector<8x256xf32>
    %c0_i32 = arith.constant 0 : i32
    %c4_i32 = arith.constant 4 : i32
    %10 = arith.addi %c0_i32, %c4_i32 : i32
    %c1_i32 = arith.constant 1 : i32
    %11 = scf.for %arg8 = %c0_i32 to %10 step %c1_i32 iter_args(%arg9 = %9) -> (vector<8x256xf32>)  : i32 {
      %c0_i32_55 = arith.constant 0 : i32
      %65 = arith.addi %c0_i32_55, %arg8 : i32
      %c8_i32 = arith.constant 8 : i32
      %66 = arith.muli %65, %c8_i32 : i32
      %c0_i32_56 = arith.constant 0 : i32
      %67 = arith.addi %66, %c0_i32_56 : i32
      %68 = arith.index_cast %67 : i32 to index
      %69 = memref.load %arg2[%68] : memref<64xf32, #tpu.memory_space<smem>>
      %70 = arith.index_cast %arg8 : i32 to index
      %c0_57 = arith.constant 0 : index
      %c0_58 = arith.constant 0 : index
      %71 = vector.load %arg1[%70, %c0_57, %c0_58] : memref<4x8x384xf32, #tpu.memory_space<vmem>>, vector<1x8x256xf32>
      %72 = vector.shape_cast %71 : vector<1x8x256xf32> to vector<8x256xf32>
      %73 = vector.broadcast %69 : f32 to vector<8x256xf32>
      %74 = arith.mulf %73, %72 : vector<8x256xf32>
      %75 = arith.addf %arg9, %74 : vector<8x256xf32>
      %c1_i32_59 = arith.constant 1 : i32
      %76 = arith.addi %66, %c1_i32_59 : i32
      %77 = arith.index_cast %76 : i32 to index
      %78 = memref.load %arg2[%77] : memref<64xf32, #tpu.memory_space<smem>>
      %79 = arith.index_cast %arg8 : i32 to index
      %c0_60 = arith.constant 0 : index
      %c1_61 = arith.constant 1 : index
      %80 = vector.load %arg1[%79, %c0_60, %c1_61] : memref<4x8x384xf32, #tpu.memory_space<vmem>>, vector<1x8x256xf32>
      %81 = vector.shape_cast %80 : vector<1x8x256xf32> to vector<8x256xf32>
      %82 = vector.broadcast %78 : f32 to vector<8x256xf32>
      %83 = arith.mulf %82, %81 : vector<8x256xf32>
      %84 = arith.addf %75, %83 : vector<8x256xf32>
      %c2_i32 = arith.constant 2 : i32
      %85 = arith.addi %66, %c2_i32 : i32
      %86 = arith.index_cast %85 : i32 to index
      %87 = memref.load %arg2[%86] : memref<64xf32, #tpu.memory_space<smem>>
      %88 = arith.index_cast %arg8 : i32 to index
      %c0_62 = arith.constant 0 : index
      %c2_63 = arith.constant 2 : index
      %89 = vector.load %arg1[%88, %c0_62, %c2_63] : memref<4x8x384xf32, #tpu.memory_space<vmem>>, vector<1x8x256xf32>
      %90 = vector.shape_cast %89 : vector<1x8x256xf32> to vector<8x256xf32>
      %91 = vector.broadcast %87 : f32 to vector<8x256xf32>
      %92 = arith.mulf %91, %90 : vector<8x256xf32>
      %93 = arith.addf %84, %92 : vector<8x256xf32>
      %c3_i32_64 = arith.constant 3 : i32
      %94 = arith.addi %66, %c3_i32_64 : i32
      %95 = arith.index_cast %94 : i32 to index
      %96 = memref.load %arg2[%95] : memref<64xf32, #tpu.memory_space<smem>>
      %97 = arith.index_cast %arg8 : i32 to index
      %c0_65 = arith.constant 0 : index
      %c3 = arith.constant 3 : index
      %98 = vector.load %arg1[%97, %c0_65, %c3] : memref<4x8x384xf32, #tpu.memory_space<vmem>>, vector<1x8x256xf32>
      %99 = vector.shape_cast %98 : vector<1x8x256xf32> to vector<8x256xf32>
      %100 = vector.broadcast %96 : f32 to vector<8x256xf32>
      %101 = arith.mulf %100, %99 : vector<8x256xf32>
      %102 = arith.addf %93, %101 : vector<8x256xf32>
      %c4_i32_66 = arith.constant 4 : i32
      %103 = arith.addi %66, %c4_i32_66 : i32
      %104 = arith.index_cast %103 : i32 to index
      %105 = memref.load %arg2[%104] : memref<64xf32, #tpu.memory_space<smem>>
      %106 = arith.index_cast %arg8 : i32 to index
      %c0_67 = arith.constant 0 : index
      %c4_68 = arith.constant 4 : index
      %107 = vector.load %arg1[%106, %c0_67, %c4_68] : memref<4x8x384xf32, #tpu.memory_space<vmem>>, vector<1x8x256xf32>
      %108 = vector.shape_cast %107 : vector<1x8x256xf32> to vector<8x256xf32>
      %109 = vector.broadcast %105 : f32 to vector<8x256xf32>
      %110 = arith.mulf %109, %108 : vector<8x256xf32>
      %111 = arith.addf %102, %110 : vector<8x256xf32>
      %c5_i32 = arith.constant 5 : i32
      %112 = arith.addi %66, %c5_i32 : i32
      %113 = arith.index_cast %112 : i32 to index
      %114 = memref.load %arg2[%113] : memref<64xf32, #tpu.memory_space<smem>>
      %115 = arith.index_cast %arg8 : i32 to index
      %c0_69 = arith.constant 0 : index
      %c5 = arith.constant 5 : index
      %116 = vector.load %arg1[%115, %c0_69, %c5] : memref<4x8x384xf32, #tpu.memory_space<vmem>>, vector<1x8x256xf32>
      %117 = vector.shape_cast %116 : vector<1x8x256xf32> to vector<8x256xf32>
      %118 = vector.broadcast %114 : f32 to vector<8x256xf32>
      %119 = arith.mulf %118, %117 : vector<8x256xf32>
      %120 = arith.addf %111, %119 : vector<8x256xf32>
      %c6_i32 = arith.constant 6 : i32
      %121 = arith.addi %66, %c6_i32 : i32
      %122 = arith.index_cast %121 : i32 to index
      %123 = memref.load %arg2[%122] : memref<64xf32, #tpu.memory_space<smem>>
      %124 = arith.index_cast %arg8 : i32 to index
      %c0_70 = arith.constant 0 : index
      %c6 = arith.constant 6 : index
      %125 = vector.load %arg1[%124, %c0_70, %c6] : memref<4x8x384xf32, #tpu.memory_space<vmem>>, vector<1x8x256xf32>
      %126 = vector.shape_cast %125 : vector<1x8x256xf32> to vector<8x256xf32>
      %127 = vector.broadcast %123 : f32 to vector<8x256xf32>
      %128 = arith.mulf %127, %126 : vector<8x256xf32>
      %129 = arith.addf %120, %128 : vector<8x256xf32>
      %c7_i32 = arith.constant 7 : i32
      %130 = arith.addi %66, %c7_i32 : i32
      %131 = arith.index_cast %130 : i32 to index
      %132 = memref.load %arg2[%131] : memref<64xf32, #tpu.memory_space<smem>>
      %133 = arith.index_cast %arg8 : i32 to index
      %c0_71 = arith.constant 0 : index
      %c7 = arith.constant 7 : index
      %134 = vector.load %arg1[%133, %c0_71, %c7] : memref<4x8x384xf32, #tpu.memory_space<vmem>>, vector<1x8x256xf32>
      %135 = vector.shape_cast %134 : vector<1x8x256xf32> to vector<8x256xf32>
      %136 = vector.broadcast %132 : f32 to vector<8x256xf32>
      %137 = arith.mulf %136, %135 : vector<8x256xf32>
      %138 = arith.addf %129, %137 : vector<8x256xf32>
      scf.yield %138 : vector<8x256xf32>
    }
    %c4_i32_3 = arith.constant 4 : i32
    %c0_4 = arith.constant 0 : index
    %12 = memref.load %arg3[%c0_4] : memref<2xf32, #tpu.memory_space<smem>>
    %13 = vector.broadcast %12 : f32 to vector<8x256xf32>
    %14 = arith.addf %11, %13 : vector<8x256xf32>
    %cst_5 = arith.constant 0.000000e+00 : f32
    %15 = vector.broadcast %cst_5 : f32 to vector<8x256xf32>
    %16 = arith.select %5, %14, %15 : vector<8x256xi1>, vector<8x256xf32>
    %c0_6 = arith.constant 0 : index
    %c0_7 = arith.constant 0 : index
    %17 = vector.load %arg7[%c0_6, %c0_7] : memref<8x384xf32, #tpu.memory_space<vmem>>, vector<8x256xf32>
    tpu.vector_store %arg7[%c0_6, %c0_7], %16 {strides = array<i32>} : memref<8x384xf32, #tpu.memory_space<vmem>>, vector<8x256xf32>,
    %c0_8 = arith.constant 0 : index
    %c1 = arith.constant 1 : index
    %18 = vector.load %arg7[%c0_8, %c1] : memref<8x384xf32, #tpu.memory_space<vmem>>, vector<8x256xf32>
    %19 = arith.maximumf %16, %18 : vector<8x256xf32>
    %c0_9 = arith.constant 0 : index
    %c0_10 = arith.constant 0 : index
    %20 = vector.load %arg7[%c0_9, %c0_10] : memref<8x384xf32, #tpu.memory_space<vmem>>, vector<8x256xf32>
    tpu.vector_store %arg7[%c0_9, %c0_10], %19 {strides = array<i32>} : memref<8x384xf32, #tpu.memory_space<vmem>>, vector<8x256xf32>,
    %c0_11 = arith.constant 0 : index
    %c2 = arith.constant 2 : index
    %21 = vector.load %arg7[%c0_11, %c2] : memref<8x384xf32, #tpu.memory_space<vmem>>, vector<8x256xf32>
    %22 = arith.maximumf %19, %21 : vector<8x256xf32>
    %c0_12 = arith.constant 0 : index
    %c0_13 = arith.constant 0 : index
    %23 = vector.load %arg7[%c0_12, %c0_13] : memref<8x384xf32, #tpu.memory_space<vmem>>, vector<8x256xf32>
    tpu.vector_store %arg7[%c0_12, %c0_13], %22 {strides = array<i32>} : memref<8x384xf32, #tpu.memory_space<vmem>>, vector<8x256xf32>,
    %c0_14 = arith.constant 0 : index
    %c4 = arith.constant 4 : index
    %24 = vector.load %arg7[%c0_14, %c4] : memref<8x384xf32, #tpu.memory_space<vmem>>, vector<8x256xf32>
    %25 = arith.maximumf %22, %24 : vector<8x256xf32>
    %c0_15 = arith.constant 0 : index
    %c0_16 = arith.constant 0 : index
    %26 = vector.load %arg7[%c0_15, %c0_16] : memref<8x384xf32, #tpu.memory_space<vmem>>, vector<8x256xf32>
    tpu.vector_store %arg7[%c0_15, %c0_16], %25 {strides = array<i32>} : memref<8x384xf32, #tpu.memory_space<vmem>>, vector<8x256xf32>,
    %c0_17 = arith.constant 0 : index
    %c8 = arith.constant 8 : index
    %27 = vector.load %arg7[%c0_17, %c8] : memref<8x384xf32, #tpu.memory_space<vmem>>, vector<8x256xf32>
    %28 = arith.maximumf %25, %27 : vector<8x256xf32>
    %cst_18 = arith.constant 0.000000e+00 : f32
    %29 = vector.broadcast %cst_18 : f32 to vector<8x256xf32>
    %30 = arith.maximumf %28, %29 : vector<8x256xf32>
    %c0_19 = arith.constant 0 : index
    %c0_20 = arith.constant 0 : index
    %c0_21 = arith.constant 0 : index
    %31 = vector.load %arg4[%c0_19, %c0_20, %c0_21] : memref<2x256x128xf32, #tpu.memory_space<vmem>>, vector<1x256x128xf32>
    %32 = vector.shape_cast %31 : vector<1x256x128xf32> to vector<256x128xf32>
    %cst_22 = arith.constant dense<0.000000e+00> : vector<8x128xf32>
    %33 = tpu.matmul %30, %32, %cst_22 {dimension_numbers = #tpu.dot_dimension_numbers<[1], [0], [0], [1], [0, 0, 1, 1], [], []>} : vector<8x256xf32>, vector<256x128xf32>, vector<8x128xf32> -> vector<8x128xf32>
    %34 = arith.addf %8, %33 : vector<8x128xf32>
    %cst_23 = arith.constant 0.000000e+00 : f32
    %35 = vector.broadcast %cst_23 : f32 to vector<8x256xf32>
    %c0_i32_24 = arith.constant 0 : i32
    %c4_i32_25 = arith.constant 4 : i32
    %36 = arith.addi %c0_i32_24, %c4_i32_25 : i32
    %c1_i32_26 = arith.constant 1 : i32
    %37 = scf.for %arg8 = %c0_i32_24 to %36 step %c1_i32_26 iter_args(%arg9 = %35) -> (vector<8x256xf32>)  : i32 {
      %c4_i32_55 = arith.constant 4 : i32
      %65 = arith.addi %c4_i32_55, %arg8 : i32
      %c8_i32 = arith.constant 8 : i32
      %66 = arith.muli %65, %c8_i32 : i32
      %c0_i32_56 = arith.constant 0 : i32
      %67 = arith.addi %66, %c0_i32_56 : i32
      %68 = arith.index_cast %67 : i32 to index
      %69 = memref.load %arg2[%68] : memref<64xf32, #tpu.memory_space<smem>>
      %70 = arith.index_cast %arg8 : i32 to index
      %c0_57 = arith.constant 0 : index
      %c0_58 = arith.constant 0 : index
      %71 = vector.load %arg1[%70, %c0_57, %c0_58] : memref<4x8x384xf32, #tpu.memory_space<vmem>>, vector<1x8x256xf32>
      %72 = vector.shape_cast %71 : vector<1x8x256xf32> to vector<8x256xf32>
      %73 = vector.broadcast %69 : f32 to vector<8x256xf32>
      %74 = arith.mulf %73, %72 : vector<8x256xf32>
      %75 = arith.addf %arg9, %74 : vector<8x256xf32>
      %c1_i32_59 = arith.constant 1 : i32
      %76 = arith.addi %66, %c1_i32_59 : i32
      %77 = arith.index_cast %76 : i32 to index
      %78 = memref.load %arg2[%77] : memref<64xf32, #tpu.memory_space<smem>>
      %79 = arith.index_cast %arg8 : i32 to index
      %c0_60 = arith.constant 0 : index
      %c1_61 = arith.constant 1 : index
      %80 = vector.load %arg1[%79, %c0_60, %c1_61] : memref<4x8x384xf32, #tpu.memory_space<vmem>>, vector<1x8x256xf32>
      %81 = vector.shape_cast %80 : vector<1x8x256xf32> to vector<8x256xf32>
      %82 = vector.broadcast %78 : f32 to vector<8x256xf32>
      %83 = arith.mulf %82, %81 : vector<8x256xf32>
      %84 = arith.addf %75, %83 : vector<8x256xf32>
      %c2_i32 = arith.constant 2 : i32
      %85 = arith.addi %66, %c2_i32 : i32
      %86 = arith.index_cast %85 : i32 to index
      %87 = memref.load %arg2[%86] : memref<64xf32, #tpu.memory_space<smem>>
      %88 = arith.index_cast %arg8 : i32 to index
      %c0_62 = arith.constant 0 : index
      %c2_63 = arith.constant 2 : index
      %89 = vector.load %arg1[%88, %c0_62, %c2_63] : memref<4x8x384xf32, #tpu.memory_space<vmem>>, vector<1x8x256xf32>
      %90 = vector.shape_cast %89 : vector<1x8x256xf32> to vector<8x256xf32>
      %91 = vector.broadcast %87 : f32 to vector<8x256xf32>
      %92 = arith.mulf %91, %90 : vector<8x256xf32>
      %93 = arith.addf %84, %92 : vector<8x256xf32>
      %c3_i32_64 = arith.constant 3 : i32
      %94 = arith.addi %66, %c3_i32_64 : i32
      %95 = arith.index_cast %94 : i32 to index
      %96 = memref.load %arg2[%95] : memref<64xf32, #tpu.memory_space<smem>>
      %97 = arith.index_cast %arg8 : i32 to index
      %c0_65 = arith.constant 0 : index
      %c3 = arith.constant 3 : index
      %98 = vector.load %arg1[%97, %c0_65, %c3] : memref<4x8x384xf32, #tpu.memory_space<vmem>>, vector<1x8x256xf32>
      %99 = vector.shape_cast %98 : vector<1x8x256xf32> to vector<8x256xf32>
      %100 = vector.broadcast %96 : f32 to vector<8x256xf32>
      %101 = arith.mulf %100, %99 : vector<8x256xf32>
      %102 = arith.addf %93, %101 : vector<8x256xf32>
      %c4_i32_66 = arith.constant 4 : i32
      %103 = arith.addi %66, %c4_i32_66 : i32
      %104 = arith.index_cast %103 : i32 to index
      %105 = memref.load %arg2[%104] : memref<64xf32, #tpu.memory_space<smem>>
      %106 = arith.index_cast %arg8 : i32 to index
      %c0_67 = arith.constant 0 : index
      %c4_68 = arith.constant 4 : index
      %107 = vector.load %arg1[%106, %c0_67, %c4_68] : memref<4x8x384xf32, #tpu.memory_space<vmem>>, vector<1x8x256xf32>
      %108 = vector.shape_cast %107 : vector<1x8x256xf32> to vector<8x256xf32>
      %109 = vector.broadcast %105 : f32 to vector<8x256xf32>
      %110 = arith.mulf %109, %108 : vector<8x256xf32>
      %111 = arith.addf %102, %110 : vector<8x256xf32>
      %c5_i32 = arith.constant 5 : i32
      %112 = arith.addi %66, %c5_i32 : i32
      %113 = arith.index_cast %112 : i32 to index
      %114 = memref.load %arg2[%113] : memref<64xf32, #tpu.memory_space<smem>>
      %115 = arith.index_cast %arg8 : i32 to index
      %c0_69 = arith.constant 0 : index
      %c5 = arith.constant 5 : index
      %116 = vector.load %arg1[%115, %c0_69, %c5] : memref<4x8x384xf32, #tpu.memory_space<vmem>>, vector<1x8x256xf32>
      %117 = vector.shape_cast %116 : vector<1x8x256xf32> to vector<8x256xf32>
      %118 = vector.broadcast %114 : f32 to vector<8x256xf32>
      %119 = arith.mulf %118, %117 : vector<8x256xf32>
      %120 = arith.addf %111, %119 : vector<8x256xf32>
      %c6_i32 = arith.constant 6 : i32
      %121 = arith.addi %66, %c6_i32 : i32
      %122 = arith.index_cast %121 : i32 to index
      %123 = memref.load %arg2[%122] : memref<64xf32, #tpu.memory_space<smem>>
      %124 = arith.index_cast %arg8 : i32 to index
      %c0_70 = arith.constant 0 : index
      %c6 = arith.constant 6 : index
      %125 = vector.load %arg1[%124, %c0_70, %c6] : memref<4x8x384xf32, #tpu.memory_space<vmem>>, vector<1x8x256xf32>
      %126 = vector.shape_cast %125 : vector<1x8x256xf32> to vector<8x256xf32>
      %127 = vector.broadcast %123 : f32 to vector<8x256xf32>
      %128 = arith.mulf %127, %126 : vector<8x256xf32>
      %129 = arith.addf %120, %128 : vector<8x256xf32>
      %c7_i32 = arith.constant 7 : i32
      %130 = arith.addi %66, %c7_i32 : i32
      %131 = arith.index_cast %130 : i32 to index
      %132 = memref.load %arg2[%131] : memref<64xf32, #tpu.memory_space<smem>>
      %133 = arith.index_cast %arg8 : i32 to index
      %c0_71 = arith.constant 0 : index
      %c7 = arith.constant 7 : index
      %134 = vector.load %arg1[%133, %c0_71, %c7] : memref<4x8x384xf32, #tpu.memory_space<vmem>>, vector<1x8x256xf32>
      %135 = vector.shape_cast %134 : vector<1x8x256xf32> to vector<8x256xf32>
      %136 = vector.broadcast %132 : f32 to vector<8x256xf32>
      %137 = arith.mulf %136, %135 : vector<8x256xf32>
      %138 = arith.addf %129, %137 : vector<8x256xf32>
      scf.yield %138 : vector<8x256xf32>
    }
    %c4_i32_27 = arith.constant 4 : i32
    %c1_28 = arith.constant 1 : index
    %38 = memref.load %arg3[%c1_28] : memref<2xf32, #tpu.memory_space<smem>>
    %39 = vector.broadcast %38 : f32 to vector<8x256xf32>
    %40 = arith.addf %37, %39 : vector<8x256xf32>
    %cst_29 = arith.constant 0.000000e+00 : f32
    %41 = vector.broadcast %cst_29 : f32 to vector<8x256xf32>
    %42 = arith.select %5, %40, %41 : vector<8x256xi1>, vector<8x256xf32>
    %c0_30 = arith.constant 0 : index
    %c0_31 = arith.constant 0 : index
    %43 = vector.load %arg7[%c0_30, %c0_31] : memref<8x384xf32, #tpu.memory_space<vmem>>, vector<8x256xf32>
    tpu.vector_store %arg7[%c0_30, %c0_31], %42 {strides = array<i32>} : memref<8x384xf32, #tpu.memory_space<vmem>>, vector<8x256xf32>,
    %c0_32 = arith.constant 0 : index
    %c1_33 = arith.constant 1 : index
    %44 = vector.load %arg7[%c0_32, %c1_33] : memref<8x384xf32, #tpu.memory_space<vmem>>, vector<8x256xf32>
    %45 = arith.maximumf %42, %44 : vector<8x256xf32>
    %c0_34 = arith.constant 0 : index
    %c0_35 = arith.constant 0 : index
    %46 = vector.load %arg7[%c0_34, %c0_35] : memref<8x384xf32, #tpu.memory_space<vmem>>, vector<8x256xf32>
    tpu.vector_store %arg7[%c0_34, %c0_35], %45 {strides = array<i32>} : memref<8x384xf32, #tpu.memory_space<vmem>>, vector<8x256xf32>,
    %c0_36 = arith.constant 0 : index
    %c2_37 = arith.constant 2 : index
    %47 = vector.load %arg7[%c0_36, %c2_37] : memref<8x384xf32, #tpu.memory_space<vmem>>, vector<8x256xf32>
    %48 = arith.maximumf %45, %47 : vector<8x256xf32>
    %c0_38 = arith.constant 0 : index
    %c0_39 = arith.constant 0 : index
    %49 = vector.load %arg7[%c0_38, %c0_39] : memref<8x384xf32, #tpu.memory_space<vmem>>, vector<8x256xf32>
    tpu.vector_store %arg7[%c0_38, %c0_39], %48 {strides = array<i32>} : memref<8x384xf32, #tpu.memory_space<vmem>>, vector<8x256xf32>,
    %c0_40 = arith.constant 0 : index
    %c4_41 = arith.constant 4 : index
    %50 = vector.load %arg7[%c0_40, %c4_41] : memref<8x384xf32, #tpu.memory_space<vmem>>, vector<8x256xf32>
    %51 = arith.maximumf %48, %50 : vector<8x256xf32>
    %c0_42 = arith.constant 0 : index
    %c0_43 = arith.constant 0 : index
    %52 = vector.load %arg7[%c0_42, %c0_43] : memref<8x384xf32, #tpu.memory_space<vmem>>, vector<8x256xf32>
    tpu.vector_store %arg7[%c0_42, %c0_43], %51 {strides = array<i32>} : memref<8x384xf32, #tpu.memory_space<vmem>>, vector<8x256xf32>,
    %c0_44 = arith.constant 0 : index
    %c8_45 = arith.constant 8 : index
    %53 = vector.load %arg7[%c0_44, %c8_45] : memref<8x384xf32, #tpu.memory_space<vmem>>, vector<8x256xf32>
    %54 = arith.maximumf %51, %53 : vector<8x256xf32>
    %cst_46 = arith.constant 0.000000e+00 : f32
    %55 = vector.broadcast %cst_46 : f32 to vector<8x256xf32>
    %56 = arith.maximumf %54, %55 : vector<8x256xf32>
    %c1_47 = arith.constant 1 : index
    %c0_48 = arith.constant 0 : index
    %c0_49 = arith.constant 0 : index
    %57 = vector.load %arg4[%c1_47, %c0_48, %c0_49] : memref<2x256x128xf32, #tpu.memory_space<vmem>>, vector<1x256x128xf32>
    %58 = vector.shape_cast %57 : vector<1x256x128xf32> to vector<256x128xf32>
    %cst_50 = arith.constant dense<0.000000e+00> : vector<8x128xf32>
    %59 = tpu.matmul %56, %58, %cst_50 {dimension_numbers = #tpu.dot_dimension_numbers<[1], [0], [0], [1], [0, 0, 1, 1], [], []>} : vector<8x256xf32>, vector<256x128xf32>, vector<8x128xf32> -> vector<8x128xf32>
    %60 = arith.addf %34, %59 : vector<8x128xf32>
    %c0_51 = arith.constant 0 : index
    %c0_52 = arith.constant 0 : index
    %61 = vector.load %arg5[%c0_51, %c0_52] : memref<1x128xf32, #tpu.memory_space<vmem>>, vector<1x128xf32>
    %62 = vector.broadcast %61 : vector<1x128xf32> to vector<8x128xf32>
    %63 = arith.addf %60, %62 : vector<8x128xf32>
    %c0_53 = arith.constant 0 : index
    %c0_54 = arith.constant 0 : index
    %64 = vector.load %arg6[%c0_53, %c0_54] : memref<8x128xf32, #tpu.memory_space<vmem>>, vector<8x128xf32>
    tpu.vector_store %arg6[%c0_53, %c0_54], %63 {strides = array<i32>} : memref<8x128xf32, #tpu.memory_space<vmem>>, vector<8x128xf32>,
    return
  }
  func.func @transform_0(%arg0: i32) -> (i32, i32, i32) {
    %c0_i32 = arith.constant 0 : i32
    %c0_i32_0 = arith.constant 0 : i32
    %c0_i32_1 = arith.constant 0 : i32
    return %c0_i32, %arg0, %c0_i32_0 : i32, i32, i32
  }
  func.func @transform_1(%arg0: i32) -> i32 {
    %c0_i32 = arith.constant 0 : i32
    %c0_i32_0 = arith.constant 0 : i32
    return %c0_i32 : i32
  }
  func.func @transform_2(%arg0: i32) -> i32 {
    %c0_i32 = arith.constant 0 : i32
    %c0_i32_0 = arith.constant 0 : i32
    return %c0_i32 : i32
  }
  func.func @transform_3(%arg0: i32) -> (i32, i32, i32) {
    %c0_i32 = arith.constant 0 : i32
    %c0_i32_0 = arith.constant 0 : i32
    %c0_i32_1 = arith.constant 0 : i32
    %c0_i32_2 = arith.constant 0 : i32
    return %c0_i32, %c0_i32_0, %c0_i32_1 : i32, i32, i32
  }
  func.func @transform_4(%arg0: i32) -> (i32, i32) {
    %c0_i32 = arith.constant 0 : i32
    %c0_i32_0 = arith.constant 0 : i32
    %c0_i32_1 = arith.constant 0 : i32
    return %c0_i32, %c0_i32_0 : i32, i32
  }
  func.func @transform_5(%arg0: i32) -> (i32, i32) {
    %c0_i32 = arith.constant 0 : i32
    %c0_i32_0 = arith.constant 0 : i32
    return %arg0, %c0_i32 : i32, i32
  }
}

</mosaic_0001>

<llo_original>
// kernel: tpu_custom_call.1
$region0: #{tpu_custom_call.1}
  #allocation0 [shape = 'u32[]', space=smem, size = 0x4, offset = 0x4, fixed_abs, tag = 'smem constant byte address 0x4 - core index']
  #allocation1 [shape = 'u32[72,128]{1,0:T(1,128)}', space=vmem, size = 0x9000, scoped, tag = 'internal scratch']
  #allocation2 [shape = 'f32[8,384]{1,0:T(8,128)}', space=vmem, size = 0x3000, scoped, tag = 'scratch operand']
  %s0 = inlined_call_operand.hbm [shape: f32[4,8,384], index: 0, kind: input, shape index: {}]
  %s1 = inlined_call_operand.hbm [shape: f32[64], index: 1, kind: input, shape index: {}]
  %s2 = inlined_call_operand.vmem [shape: f32[2], index: 2, kind: input, shape index: {}]
  %s3 = inlined_call_operand.hbm [shape: f32[2,256,128], index: 3, kind: input, shape index: {}]
  %s4 = inlined_call_operand.vmem [shape: f32[1,128], index: 4, kind: input, shape index: {}]
  %s5 = inlined_call_operand.hbm [shape: f32[8,128], index: 5, kind: output, shape index: {}]
  %s6 = sld [smem:[#allocation0]]
  $region60: #{tpu_custom_call.1} parent=0
    _
  %s8 = ssub.s32 1, %s6
  %s9 = scalar_select 0, %s8, %s6
  $region1: #{tpu_custom_call.1} parent=0
    #allocation3 [shape = 'u8[49152]{0}', space=vmem, size = 0xc000, scoped, tag = 'input window, operand 0, single buffered']
    #allocation4 [shape = 's32[1]{0}', space=sflag, size = 0x4, scoped, tag = 'scoped memory for tpu_custom_call.1']
    #allocation5 [shape = 's32[1]{0}', space=sflag, size = 0x4, scoped, tag = 'scoped memory for tpu_custom_call.1']
    #allocation6 [shape = 's32[1]{0}', space=sflag, size = 0x4, scoped, tag = 'scoped memory for tpu_custom_call.1']
    #allocation7 [shape = 's32[1]{0}', space=sflag, size = 0x4, scoped, tag = 'scoped memory for tpu_custom_call.1']
    #allocation8 [shape = 'u8[512]{0}', space=smem, size = 0x200, scoped, tag = 'input window, operand 1, single buffered']
    #allocation9 [shape = 'u8[512]{0}', space=smem, size = 0x200, scoped, tag = 'input window, operand 2, single buffered']
    #allocation10 [shape = 'u8[262144]{0}', space=vmem, size = 0x40000, scoped, tag = 'input window, operand 3, single buffered']
    #allocation11 [shape = 's32[1]{0}', space=sflag, size = 0x4, scoped, tag = 'scoped memory for tpu_custom_call.1']
    #allocation12 [shape = 'u8[4096]{0}', space=vmem, size = 0x1000, scoped, tag = 'output window, operand 0, single buffered']
    %10 = vsyncpa [#allocation4], 0
    %11 = vsyncpa [#allocation6], 0
    %12 = vsyncpa [#allocation7], 0
    %13 = vsyncpa [#allocation11], 0
    %14 = vsyncpa [#allocation5], 0
    // Predicated region
    $region2: #{tpu_custom_call.1} parent=1 // pred_check
      _
    $region3: #{tpu_custom_call.1} parent=1 // pred_check_branch
      %16 = sbr.rel (0) target = $region5
    $region4: #{tpu_custom_call.1} parent=1 // pred_region
      %18 = vsyncadd [#allocation4], 0
      %s19 = sshll.u32 %s0, 4
      %s20 = int_to_ptr.hbm [resolvable:$true] %s19
      %s21 = sshll.u32 [#allocation3], 4
      %s22 = int_to_ptr.vmem [resolvable:$true] %s21
      %27 = dma.hbm_to_vmem [thread:$0]  %s20, 1536, %s22, [#allocation4], 384, 384, 24
    $region5: #{tpu_custom_call.1} parent=1 // pred_fallthru
      _
    // Predicated region
    $region6: #{tpu_custom_call.1} parent=1 // pred_check
      _
    $region7: #{tpu_custom_call.1} parent=1 // pred_check_branch
      %29 = sbr.rel (0) target = $region9
    $region8: #{tpu_custom_call.1} parent=1 // pred_region
      %31 = vsyncadd [#allocation6], 0
      %s33 = sshll.u32 %s1, 4
      %s34 = int_to_ptr.hbm [resolvable:$true] %s33
      %36 = dma.hbm_to_smem %s34, 16, [#allocation8], [#allocation6]
    $region9: #{tpu_custom_call.1} parent=1 // pred_fallthru
      _
    // Predicated region
    $region10: #{tpu_custom_call.1} parent=1 // pred_check
      _
    $region11: #{tpu_custom_call.1} parent=1 // pred_check_branch
      %38 = sbr.rel (0) target = $region13
    $region12: #{tpu_custom_call.1} parent=1 // pred_region
      %40 = vsyncadd [#allocation7], 0
      %s42 = sshll.u32 %s2, 4
      %s43 = int_to_ptr.vmem [resolvable:$true] %s42
      %45 = dma.vmem_to_smem %s43, 16, [#allocation9], [#allocation7]
    $region13: #{tpu_custom_call.1} parent=1 // pred_fallthru
      _
    // Predicated region
    $region14: #{tpu_custom_call.1} parent=1 // pred_check
      _
    $region15: #{tpu_custom_call.1} parent=1 // pred_check_branch
      %47 = sbr.rel (0) target = $region17
    $region16: #{tpu_custom_call.1} parent=1 // pred_region
      %49 = vsyncadd [#allocation11], 0
      %s50 = sshll.u32 %s3, 4
      %s51 = int_to_ptr.hbm [resolvable:$true] %s50
      %s52 = sshll.u32 [#allocation10], 4
      %s53 = int_to_ptr.vmem [resolvable:$true] %s52
      %58 = dma.hbm_to_vmem [thread:$0]  %s51, 8192, %s53, [#allocation11], 128, 128, 8
    $region17: #{tpu_custom_call.1} parent=1 // pred_fallthru
      _
    // Predicated region
    $region18: #{tpu_custom_call.1} parent=1 // pred_check
      _
    $region19: #{tpu_custom_call.1} parent=1 // pred_check_branch
      %60 = sbr.rel (0) target = $region21
    $region20: #{tpu_custom_call.1} parent=1 // pred_region
      _
    $region21: #{tpu_custom_call.1} parent=1 // pred_fallthru
      _
    // Predicated region
    $region22: #{tpu_custom_call.1} parent=1 // pred_check
      _
    $region23: #{tpu_custom_call.1} parent=1 // pred_check_branch
      %62 = sbr.rel (0) target = $region25
    $region24: #{tpu_custom_call.1} parent=1 // pred_region
      %64 = dma.done [#allocation4], 1536
    $region25: #{tpu_custom_call.1} parent=1 // pred_fallthru
      _
    // Predicated region
    $region26: #{tpu_custom_call.1} parent=1 // pred_check
      _
    $region27: #{tpu_custom_call.1} parent=1 // pred_check_branch
      %66 = sbr.rel (0) target = $region29
    $region28: #{tpu_custom_call.1} parent=1 // pred_region
      %68 = dma.done [#allocation6], 16
    $region29: #{tpu_custom_call.1} parent=1 // pred_fallthru
      _
    // Predicated region
    $region30: #{tpu_custom_call.1} parent=1 // pred_check
      _
    $region31: #{tpu_custom_call.1} parent=1 // pred_check_branch
      %70 = sbr.rel (0) target = $region33
    $region32: #{tpu_custom_call.1} parent=1 // pred_region
      %72 = dma.done [#allocation7], 16
    $region33: #{tpu_custom_call.1} parent=1 // pred_fallthru
      _
    // Predicated region
    $region34: #{tpu_custom_call.1} parent=1 // pred_check
      _
    $region35: #{tpu_custom_call.1} parent=1 // pred_check_branch
      %74 = sbr.rel (0) target = $region37
    $region36: #{tpu_custom_call.1} parent=1 // pred_region
      %76 = dma.done [#allocation11], 8192
    $region37: #{tpu_custom_call.1} parent=1 // pred_fallthru
      _
    %77 = sfence
    %v78 = vlaneseq
    %v79 = vand.u32 %v78, 127
    %v80 = vadd.s32 %v79, 128
    %vm81 = vcmp.ge.s32.totalorder %v79, 3
    %vm82 = vcmp.ge.s32.totalorder %v80, 3
    %vm83 = vcmp.lt.s32.totalorder %v79, 163
    %vm84 = vcmp.lt.s32.totalorder %v80, 163
    %vm85 = vmand %vm81, %vm83
    %vm86 = vmand %vm82, %vm84
    %87 = vst [vmem:[#allocation2] sm:$0xff] 0.0
    %88 = vst [vmem:[#allocation2 + $0x8] sm:$0xff] 0.0
    %89 = vst [vmem:[#allocation2 + $0x10] sm:$0xff] 0.0
    loop: start=0, step=1, limit=4
    $region38: #{tpu_custom_call.1} parent=1 // loop_pre_header
      _
    $region39: #{tpu_custom_call.1} parent=1 // loop_header
      %s91 = sphi 0, %s95
      %p92 = scmp.ge.s32.totalorder %s91, 4
      %v96 = vphi 0.0, %v265
      %v97 = vphi 0.0, %v266
    $region40: #{tpu_custom_call.1} parent=1 // loop_header_branch
      %94 = sbr.rel (%p92) target = $region44
    $region41: #{tpu_custom_call.1} parent=1 // loop_body
      %s98 = smul.u32 %s91, 8
      %s99 = sld [smem:[#allocation8 + %s98]]
      %s100 = smul.u32 %s91, 3
      %s101 = smul.addr %s100, 8
      %s102 = scalar_lea.vmem [#allocation3], %s101
      %v103 = vld [vmem:[%s102] sm:$0xff]
      %v104 = vld [vmem:[%s102 + $0x8] sm:$0xff]
      %v105 = vstv %s99
      %v106 = vmul.f32 %v105, %v103
      %v107 = vmul.f32 %v105, %v104
      %v108 = vadd.f32 %v96, %v106
      %v109 = vadd.f32 %v97, %v107
      %s110 = sadd.s32 %s98, 1
      %s111 = sld [smem:[#allocation8 + %s110]]
      %v112 = vld [vmem:[%s102] sm:$0xff]
      %v113 = vld [vmem:[%s102 + $0x8] sm:$0xff]
      %v114 = vld [vmem:[%s102 + $0x10] sm:$0xff]
      %v115 = vstv %s111
      %v116 = vmul.f32 %v115, %v112
      %v117 = vmul.f32 %v115, %v113
      %v118 = vmul.f32 %v115, %v114
      %122 = vrot.lane.b32.xlu0 %v116, 127
      %v123 = vpop.permute.xlu0 %122
      %124 = vrot.lane.b32.xlu0 %v117, 127
      %v125 = vpop.permute.xlu0 %124
      %126 = vrot.lane.b32.xlu0 %v118, 127
      %v127 = vpop.permute.xlu0 %126
      %vm128 = vcmask 1039360
      %v129 = vsel %vm128, %v123, %v125
      %v130 = vsel %vm128, %v125, %v127
      %v133 = vadd.f32 %v108, %v129
      %v134 = vadd.f32 %v109, %v130
      %s135 = sadd.s32 %s98, 2
      %s136 = sld [smem:[#allocation8 + %s135]]
      %v137 = vstv %s136
      %v138 = vmul.f32 %v137, %v112
      %v139 = vmul.f32 %v137, %v113
      %v140 = vmul.f32 %v137, %v114
      %144 = vrot.lane.b32.xlu0 %v138, 126
      %v145 = vpop.permute.xlu0 %144
      %146 = vrot.lane.b32.xlu0 %v139, 126
      %v147 = vpop.permute.xlu0 %146
      %148 = vrot.lane.b32.xlu0 %v140, 126
      %v149 = vpop.permute.xlu0 %148
      %vm150 = vcmask 1031168
      %v151 = vsel %vm150, %v145, %v147
      %v152 = vsel %vm150, %v147, %v149
      %v155 = vadd.f32 %v133, %v151
      %v156 = vadd.f32 %v134, %v152
      %s157 = sadd.s32 %s98, 3
      %s158 = sld [smem:[#allocation8 + %s157]]
      %v159 = vstv %s158
      %v160 = vmul.f32 %v159, %v112
      %v161 = vmul.f32 %v159, %v113
      %v162 = vmul.f32 %v159, %v114
      %166 = vrot.lane.b32.xlu0 %v160, 125
      %v167 = vpop.permute.xlu0 %166
      %168 = vrot.lane.b32.xlu0 %v161, 125
      %v169 = vpop.permute.xlu0 %168
      %170 = vrot.lane.b32.xlu0 %v162, 125
      %v171 = vpop.permute.xlu0 %170
      %vm172 = vcmask 1022976
      %v173 = vsel %vm172, %v167, %v169
      %v174 = vsel %vm172, %v169, %v171
      %v177 = vadd.f32 %v155, %v173
      %v178 = vadd.f32 %v156, %v174
      %s179 = sadd.s32 %s98, 4
      %s180 = sld [smem:[#allocation8 + %s179]]
      %v181 = vstv %s180
      %v182 = vmul.f32 %v181, %v112
      %v183 = vmul.f32 %v181, %v113
      %v184 = vmul.f32 %v181, %v114
      %188 = vrot.lane.b32.xlu0 %v182, 124
      %v189 = vpop.permute.xlu0 %188
      %190 = vrot.lane.b32.xlu0 %v183, 124
      %v191 = vpop.permute.xlu0 %190
      %192 = vrot.lane.b32.xlu0 %v184, 124
      %v193 = vpop.permute.xlu0 %192
      %vm194 = vcmask 1014784
      %v195 = vsel %vm194, %v189, %v191
      %v196 = vsel %vm194, %v191, %v193
      %v199 = vadd.f32 %v177, %v195
      %v200 = vadd.f32 %v178, %v196
      %s201 = sadd.s32 %s98, 5
      %s202 = sld [smem:[#allocation8 + %s201]]
      %v203 = vstv %s202
      %v204 = vmul.f32 %v203, %v112
      %v205 = vmul.f32 %v203, %v113
      %v206 = vmul.f32 %v203, %v114
      %210 = vrot.lane.b32.xlu0 %v204, 123
      %v211 = vpop.permute.xlu0 %210
      %212 = vrot.lane.b32.xlu0 %v205, 123
      %v213 = vpop.permute.xlu0 %212
      %214 = vrot.lane.b32.xlu0 %v206, 123
      %v215 = vpop.permute.xlu0 %214
      %vm216 = vcmask 1006592
      %v217 = vsel %vm216, %v211, %v213
      %v218 = vsel %vm216, %v213, %v215
      %v221 = vadd.f32 %v199, %v217
      %v222 = vadd.f32 %v200, %v218
      %s223 = sadd.s32 %s98, 6
      %s224 = sld [smem:[#allocation8 + %s223]]
      %v225 = vstv %s224
      %v226 = vmul.f32 %v225, %v112
      %v227 = vmul.f32 %v225, %v113
      %v228 = vmul.f32 %v225, %v114
      %232 = vrot.lane.b32.xlu0 %v226, 122
      %v233 = vpop.permute.xlu0 %232
      %234 = vrot.lane.b32.xlu0 %v227, 122
      %v235 = vpop.permute.xlu0 %234
      %236 = vrot.lane.b32.xlu0 %v228, 122
      %v237 = vpop.permute.xlu0 %236
      %vm238 = vcmask 998400
      %v239 = vsel %vm238, %v233, %v235
      %v240 = vsel %vm238, %v235, %v237
      %v243 = vadd.f32 %v221, %v239
      %v244 = vadd.f32 %v222, %v240
      %s245 = sadd.s32 %s98, 7
      %s246 = sld [smem:[#allocation8 + %s245]]
      %v247 = vstv %s246
      %v248 = vmul.f32 %v247, %v112
      %v249 = vmul.f32 %v247, %v113
      %v250 = vmul.f32 %v247, %v114
      %254 = vrot.lane.b32.xlu0 %v248, 121
      %v255 = vpop.permute.xlu0 %254
      %256 = vrot.lane.b32.xlu0 %v249, 121
      %v257 = vpop.permute.xlu0 %256
      %258 = vrot.lane.b32.xlu0 %v250, 121
      %v259 = vpop.permute.xlu0 %258
      %vm260 = vcmask 990208
      %v261 = vsel %vm260, %v255, %v257
      %v262 = vsel %vm260, %v257, %v259
      %v265 = vadd.f32 %v243, %v261
      %v266 = vadd.f32 %v244, %v262
    $region42: #{tpu_custom_call.1} parent=1 // loop_footer
      %s95 = sadd.s32 1, %s91
    $region43: #{tpu_custom_call.1} parent=1 // loop_footer_branch
      %90 = sbr.rel target = $region39
    $region44: #{tpu_custom_call.1} parent=1 // loop_exit
      _
    %s267 = sld [smem:[#allocation9]]
    %v268 = vstv %s267
    %v269 = vadd.f32 %v96, %v268
    %v270 = vadd.f32 %v97, %v268
    %v271 = vsel %vm85, %v269, 0.0
    %v272 = vsel %vm86, %v270, 0.0
    %273 = vst [vmem:[#allocation2] sm:$0xff] %v271
    %274 = vst [vmem:[#allocation2 + $0x8] sm:$0xff] %v272
    %v275 = vld [vmem:[#allocation2] sm:$0xff]
    %v276 = vld [vmem:[#allocation2 + $0x8] sm:$0xff]
    %v277 = vld [vmem:[#allocation2 + $0x10] sm:$0xff]
    %281 = vrot.lane.b32.xlu0 %v275, 127
    %v282 = vpop.permute.xlu0 %281
    %283 = vrot.lane.b32.xlu0 %v276, 127
    %v284 = vpop.permute.xlu0 %283
    %285 = vrot.lane.b32.xlu0 %v277, 127
    %v286 = vpop.permute.xlu0 %285
    %vm287 = vcmask 1039360
    %v288 = vsel %vm287, %v282, %v284
    %v289 = vsel %vm287, %v284, %v286
    %v292 = vmax.f32 %v271, %v288
    %v293 = vmax.f32 %v272, %v289
    %294 = vst [vmem:[#allocation2] sm:$0xff] %v292
    %295 = vst [vmem:[#allocation2 + $0x8] sm:$0xff] %v293
    %v296 = vld [vmem:[#allocation2] sm:$0xff]
    %v297 = vld [vmem:[#allocation2 + $0x8] sm:$0xff]
    %v298 = vld [vmem:[#allocation2 + $0x10] sm:$0xff]
    %302 = vrot.lane.b32.xlu0 %v296, 126
    %v303 = vpop.permute.xlu0 %302
    %304 = vrot.lane.b32.xlu0 %v297, 126
    %v305 = vpop.permute.xlu0 %304
    %306 = vrot.lane.b32.xlu0 %v298, 126
    %v307 = vpop.permute.xlu0 %306
    %vm308 = vcmask 1031168
    %v309 = vsel %vm308, %v303, %v305
    %v310 = vsel %vm308, %v305, %v307
    %v313 = vmax.f32 %v292, %v309
    %v314 = vmax.f32 %v293, %v310
    %315 = vst [vmem:[#allocation2] sm:$0xff] %v313
    %316 = vst [vmem:[#allocation2 + $0x8] sm:$0xff] %v314
    %v317 = vld [vmem:[#allocation2] sm:$0xff]
    %v318 = vld [vmem:[#allocation2 + $0x8] sm:$0xff]
    %v319 = vld [vmem:[#allocation2 + $0x10] sm:$0xff]
    %323 = vrot.lane.b32.xlu0 %v317, 124
    %v324 = vpop.permute.xlu0 %323
    %325 = vrot.lane.b32.xlu0 %v318, 124
    %v326 = vpop.permute.xlu0 %325
    %327 = vrot.lane.b32.xlu0 %v319, 124
    %v328 = vpop.permute.xlu0 %327
    %vm329 = vcmask 1014784
    %v330 = vsel %vm329, %v324, %v326
    %v331 = vsel %vm329, %v326, %v328
    %v334 = vmax.f32 %v313, %v330
    %v335 = vmax.f32 %v314, %v331
    %336 = vst [vmem:[#allocation2] sm:$0xff] %v334
    %337 = vst [vmem:[#allocation2 + $0x8] sm:$0xff] %v335
    %v338 = vld [vmem:[#allocation2] sm:$0xff]
    %v339 = vld [vmem:[#allocation2 + $0x8] sm:$0xff]
    %v340 = vld [vmem:[#allocation2 + $0x10] sm:$0xff]
    %344 = vrot.lane.b32.xlu0 %v338, 120
    %v345 = vpop.permute.xlu0 %344
    %346 = vrot.lane.b32.xlu0 %v339, 120
    %v347 = vpop.permute.xlu0 %346
    %348 = vrot.lane.b32.xlu0 %v340, 120
    %v349 = vpop.permute.xlu0 %348
    %vm350 = vcmask 982016
    %v351 = vsel %vm350, %v345, %v347
    %v352 = vsel %vm350, %v347, %v349
    %v355 = vmax.f32 %v334, %v351
    %v356 = vmax.f32 %v335, %v352
    %v357 = vmax.f32 %v355, 0.0
    %v358 = vmax.f32 %v356, 0.0
    %v359 = vld [vmem:[#allocation10] sm:$0xff]
    %v360 = vld [vmem:[#allocation10 + $0x8] sm:$0xff]
    %v361 = vld [vmem:[#allocation10 + $0x10] sm:$0xff]
    %v362 = vld [vmem:[#allocation10 + $0x18] sm:$0xff]
    %v363 = vld [vmem:[#allocation10 + $0x20] sm:$0xff]
    %v364 = vld [vmem:[#allocation10 + $0x28] sm:$0xff]
    %v365 = vld [vmem:[#allocation10 + $0x30] sm:$0xff]
    %v366 = vld [vmem:[#allocation10 + $0x38] sm:$0xff]
    %v367 = vld [vmem:[#allocation10 + $0x40] sm:$0xff]
    %v368 = vld [vmem:[#allocation10 + $0x48] sm:$0xff]
    %v369 = vld [vmem:[#allocation10 + $0x50] sm:$0xff]
    %v370 = vld [vmem:[#allocation10 + $0x58] sm:$0xff]
    %v371 = vld [vmem:[#allocation10 + $0x60] sm:$0xff]
    %v372 = vld [vmem:[#allocation10 + $0x68] sm:$0xff]
    %v373 = vld [vmem:[#allocation10 + $0x70] sm:$0xff]
    %v374 = vld [vmem:[#allocation10 + $0x78] sm:$0xff]
    %v375 = vld [vmem:[#allocation10 + $0x80] sm:$0xff]
    %v376 = vld [vmem:[#allocation10 + $0x88] sm:$0xff]
    %v377 = vld [vmem:[#allocation10 + $0x90] sm:$0xff]
    %v378 = vld [vmem:[#allocation10 + $0x98] sm:$0xff]
    %v379 = vld [vmem:[#allocation10 + $0xa0] sm:$0xff]
    %v380 = vld [vmem:[#allocation10 + $0xa8] sm:$0xff]
    %v381 = vld [vmem:[#allocation10 + $0xb0] sm:$0xff]
    %v382 = vld [vmem:[#allocation10 + $0xb8] sm:$0xff]
    %v383 = vld [vmem:[#allocation10 + $0xc0] sm:$0xff]
    %v384 = vld [vmem:[#allocation10 + $0xc8] sm:$0xff]
    %v385 = vld [vmem:[#allocation10 + $0xd0] sm:$0xff]
    %v386 = vld [vmem:[#allocation10 + $0xd8] sm:$0xff]
    %v387 = vld [vmem:[#allocation10 + $0xe0] sm:$0xff]
    %v388 = vld [vmem:[#allocation10 + $0xe8] sm:$0xff]
    %v389 = vld [vmem:[#allocation10 + $0xf0] sm:$0xff]
    %v390 = vld [vmem:[#allocation10 + $0xf8] sm:$0xff]
    loop: start=0, step=1, limit=4
    $region45: #{tpu_custom_call.1} parent=1 // loop_pre_header
      _
    $region46: #{tpu_custom_call.1} parent=1 // loop_header
      %s392 = sphi 0, %s396
      %p393 = scmp.ge.s32.totalorder %s392, 4
      %v397 = vphi 0.0, %v564
      %v398 = vphi 0.0, %v565
    $region47: #{tpu_custom_call.1} parent=1 // loop_header_branch
      %395 = sbr.rel (%p393) target = $region51
    $region48: #{tpu_custom_call.1} parent=1 // loop_body
      %s399 = sadd.s32 %s392, 4
      %s400 = smul.u32 %s399, 8
      %s401 = sld [smem:[#allocation8 + %s400]]
      %s402 = smul.u32 %s392, 3
      %s403 = smul.addr %s402, 8
      %s404 = scalar_lea.vmem [#allocation3], %s403
      %v405 = vld [vmem:[%s404] sm:$0xff]
      %v406 = vld [vmem:[%s404 + $0x8] sm:$0xff]
      %v407 = vstv %s401
      %v408 = vmul.f32 %v407, %v405
      %v409 = vmul.f32 %v407, %v406
      %v410 = vadd.f32 %v397, %v408
      %v411 = vadd.f32 %v398, %v409
      %s412 = sadd.s32 %s400, 1
      %s413 = sld [smem:[#allocation8 + %s412]]
      %v414 = vld [vmem:[%s404] sm:$0xff]
      %v415 = vld [vmem:[%s404 + $0x8] sm:$0xff]
      %v416 = vld [vmem:[%s404 + $0x10] sm:$0xff]
      %v417 = vstv %s413
      %v418 = vmul.f32 %v417, %v414
      %v419 = vmul.f32 %v417, %v415
      %v420 = vmul.f32 %v417, %v416
      %424 = vrot.lane.b32.xlu0 %v418, 127
      %v425 = vpop.permute.xlu0 %424
      %426 = vrot.lane.b32.xlu0 %v419, 127
      %v427 = vpop.permute.xlu0 %426
      %428 = vrot.lane.b32.xlu0 %v420, 127
      %v429 = vpop.permute.xlu0 %428
      %v430 = vsel %vm287, %v425, %v427
      %v431 = vsel %vm287, %v427, %v429
      %v434 = vadd.f32 %v410, %v430
      %v435 = vadd.f32 %v411, %v431
      %s436 = sadd.s32 %s400, 2
      %s437 = sld [smem:[#allocation8 + %s436]]
      %v438 = vstv %s437
      %v439 = vmul.f32 %v438, %v414
      %v440 = vmul.f32 %v438, %v415
      %v441 = vmul.f32 %v438, %v416
      %445 = vrot.lane.b32.xlu0 %v439, 126
      %v446 = vpop.permute.xlu0 %445
      %447 = vrot.lane.b32.xlu0 %v440, 126
      %v448 = vpop.permute.xlu0 %447
      %449 = vrot.lane.b32.xlu0 %v441, 126
      %v450 = vpop.permute.xlu0 %449
      %v451 = vsel %vm308, %v446, %v448
      %v452 = vsel %vm308, %v448, %v450
      %v455 = vadd.f32 %v434, %v451
      %v456 = vadd.f32 %v435, %v452
      %s457 = sadd.s32 %s400, 3
      %s458 = sld [smem:[#allocation8 + %s457]]
      %v459 = vstv %s458
      %v460 = vmul.f32 %v459, %v414
      %v461 = vmul.f32 %v459, %v415
      %v462 = vmul.f32 %v459, %v416
      %466 = vrot.lane.b32.xlu0 %v460, 125
      %v467 = vpop.permute.xlu0 %466
      %468 = vrot.lane.b32.xlu0 %v461, 125
      %v469 = vpop.permute.xlu0 %468
      %470 = vrot.lane.b32.xlu0 %v462, 125
      %v471 = vpop.permute.xlu0 %470
      %vm472 = vcmask 1022976
      %v473 = vsel %vm472, %v467, %v469
      %v474 = vsel %vm472, %v469, %v471
      %v477 = vadd.f32 %v455, %v473
      %v478 = vadd.f32 %v456, %v474
      %s479 = sadd.s32 %s400, 4
      %s480 = sld [smem:[#allocation8 + %s479]]
      %v481 = vstv %s480
      %v482 = vmul.f32 %v481, %v414
      %v483 = vmul.f32 %v481, %v415
      %v484 = vmul.f32 %v481, %v416
      %488 = vrot.lane.b32.xlu0 %v482, 124
      %v489 = vpop.permute.xlu0 %488
      %490 = vrot.lane.b32.xlu0 %v483, 124
      %v491 = vpop.permute.xlu0 %490
      %492 = vrot.lane.b32.xlu0 %v484, 124
      %v493 = vpop.permute.xlu0 %492
      %v494 = vsel %vm329, %v489, %v491
      %v495 = vsel %vm329, %v491, %v493
      %v498 = vadd.f32 %v477, %v494
      %v499 = vadd.f32 %v478, %v495
      %s500 = sadd.s32 %s400, 5
      %s501 = sld [smem:[#allocation8 + %s500]]
      %v502 = vstv %s501
      %v503 = vmul.f32 %v502, %v414
      %v504 = vmul.f32 %v502, %v415
      %v505 = vmul.f32 %v502, %v416
      %509 = vrot.lane.b32.xlu0 %v503, 123
      %v510 = vpop.permute.xlu0 %509
      %511 = vrot.lane.b32.xlu0 %v504, 123
      %v512 = vpop.permute.xlu0 %511
      %513 = vrot.lane.b32.xlu0 %v505, 123
      %v514 = vpop.permute.xlu0 %513
      %vm515 = vcmask 1006592
      %v516 = vsel %vm515, %v510, %v512
      %v517 = vsel %vm515, %v512, %v514
      %v520 = vadd.f32 %v498, %v516
      %v521 = vadd.f32 %v499, %v517
      %s522 = sadd.s32 %s400, 6
      %s523 = sld [smem:[#allocation8 + %s522]]
      %v524 = vstv %s523
      %v525 = vmul.f32 %v524, %v414
      %v526 = vmul.f32 %v524, %v415
      %v527 = vmul.f32 %v524, %v416
      %531 = vrot.lane.b32.xlu0 %v525, 122
      %v532 = vpop.permute.xlu0 %531
      %533 = vrot.lane.b32.xlu0 %v526, 122
      %v534 = vpop.permute.xlu0 %533
      %535 = vrot.lane.b32.xlu0 %v527, 122
      %v536 = vpop.permute.xlu0 %535
      %vm537 = vcmask 998400
      %v538 = vsel %vm537, %v532, %v534
      %v539 = vsel %vm537, %v534, %v536
      %v542 = vadd.f32 %v520, %v538
      %v543 = vadd.f32 %v521, %v539
      %s544 = sadd.s32 %s400, 7
      %s545 = sld [smem:[#allocation8 + %s544]]
      %v546 = vstv %s545
      %v547 = vmul.f32 %v546, %v414
      %v548 = vmul.f32 %v546, %v415
      %v549 = vmul.f32 %v546, %v416
      %553 = vrot.lane.b32.xlu0 %v547, 121
      %v554 = vpop.permute.xlu0 %553
      %555 = vrot.lane.b32.xlu0 %v548, 121
      %v556 = vpop.permute.xlu0 %555
      %557 = vrot.lane.b32.xlu0 %v549, 121
      %v558 = vpop.permute.xlu0 %557
      %vm559 = vcmask 990208
      %v560 = vsel %vm559, %v554, %v556
      %v561 = vsel %vm559, %v556, %v558
      %v564 = vadd.f32 %v542, %v560
      %v565 = vadd.f32 %v543, %v561
    $region49: #{tpu_custom_call.1} parent=1 // loop_footer
      %s396 = sadd.s32 1, %s392
    $region50: #{tpu_custom_call.1} parent=1 // loop_footer_branch
      %391 = sbr.rel target = $region46
    $region51: #{tpu_custom_call.1} parent=1 // loop_exit
      _
    %s566 = sld [smem:[#allocation9 + $0x1]]
    %v567 = vstv %s566
    %v568 = vadd.f32 %v397, %v567
    %v569 = vadd.f32 %v398, %v567
    %v570 = vsel %vm85, %v568, 0.0
    %v571 = vsel %vm86, %v569, 0.0
    %572 = vst [vmem:[#allocation2] sm:$0xff] %v570
    %573 = vst [vmem:[#allocation2 + $0x8] sm:$0xff] %v571
    %v574 = vld [vmem:[#allocation2] sm:$0xff]
    %v575 = vld [vmem:[#allocation2 + $0x8] sm:$0xff]
    %v576 = vld [vmem:[#allocation2 + $0x10] sm:$0xff]
    %580 = vrot.lane.b32.xlu0 %v574, 127
    %v581 = vpop.permute.xlu0 %580
    %582 = vrot.lane.b32.xlu0 %v575, 127
    %v583 = vpop.permute.xlu0 %582
    %584 = vrot.lane.b32.xlu0 %v576, 127
    %v585 = vpop.permute.xlu0 %584
    %v586 = vsel %vm287, %v581, %v583
    %v587 = vsel %vm287, %v583, %v585
    %v590 = vmax.f32 %v570, %v586
    %v591 = vmax.f32 %v571, %v587
    %592 = vst [vmem:[#allocation2] sm:$0xff] %v590
    %593 = vst [vmem:[#allocation2 + $0x8] sm:$0xff] %v591
    %v594 = vld [vmem:[#allocation2] sm:$0xff]
    %v595 = vld [vmem:[#allocation2 + $0x8] sm:$0xff]
    %v596 = vld [vmem:[#allocation2 + $0x10] sm:$0xff]
    %600 = vrot.lane.b32.xlu0 %v594, 126
    %v601 = vpop.permute.xlu0 %600
    %602 = vrot.lane.b32.xlu0 %v595, 126
    %v603 = vpop.permute.xlu0 %602
    %604 = vrot.lane.b32.xlu0 %v596, 126
    %v605 = vpop.permute.xlu0 %604
    %v606 = vsel %vm308, %v601, %v603
    %v607 = vsel %vm308, %v603, %v605
    %v610 = vmax.f32 %v590, %v606
    %v611 = vmax.f32 %v591, %v607
    %612 = vst [vmem:[#allocation2] sm:$0xff] %v610
    %613 = vst [vmem:[#allocation2 + $0x8] sm:$0xff] %v611
    %v614 = vld [vmem:[#allocation2] sm:$0xff]
    %v615 = vld [vmem:[#allocation2 + $0x8] sm:$0xff]
    %v616 = vld [vmem:[#allocation2 + $0x10] sm:$0xff]
    %620 = vrot.lane.b32.xlu0 %v614, 124
    %v621 = vpop.permute.xlu0 %620
    %622 = vrot.lane.b32.xlu0 %v615, 124
    %v623 = vpop.permute.xlu0 %622
    %624 = vrot.lane.b32.xlu0 %v616, 124
    %v625 = vpop.permute.xlu0 %624
    %v626 = vsel %vm329, %v621, %v623
    %v627 = vsel %vm329, %v623, %v625
    %v630 = vmax.f32 %v610, %v626
    %v631 = vmax.f32 %v611, %v627
    %632 = vst [vmem:[#allocation2] sm:$0xff] %v630
    %633 = vst [vmem:[#allocation2 + $0x8] sm:$0xff] %v631
    %v634 = vld [vmem:[#allocation2] sm:$0xff]
    %v635 = vld [vmem:[#allocation2 + $0x8] sm:$0xff]
    %v636 = vld [vmem:[#allocation2 + $0x10] sm:$0xff]
    %640 = vrot.lane.b32.xlu0 %v634, 120
    %v641 = vpop.permute.xlu0 %640
    %642 = vrot.lane.b32.xlu0 %v635, 120
    %v643 = vpop.permute.xlu0 %642
    %644 = vrot.lane.b32.xlu0 %v636, 120
    %v645 = vpop.permute.xlu0 %644
    %v646 = vsel %vm350, %v641, %v643
    %v647 = vsel %vm350, %v643, %v645
    %v650 = vmax.f32 %v630, %v646
    %v651 = vmax.f32 %v631, %v647
    %v652 = vmax.f32 %v650, 0.0
    %v653 = vmax.f32 %v651, 0.0
    %s654 = scalar_lea.vmem [#allocation10], 256
    %v655 = vld [vmem:[%s654] sm:$0xff]
    %v656 = vld [vmem:[%s654 + $0x8] sm:$0xff]
    %v657 = vld [vmem:[%s654 + $0x10] sm:$0xff]
    %v658 = vld [vmem:[%s654 + $0x18] sm:$0xff]
    %v659 = vld [vmem:[%s654 + $0x20] sm:$0xff]
    %v660 = vld [vmem:[%s654 + $0x28] sm:$0xff]
    %v661 = vld [vmem:[%s654 + $0x30] sm:$0xff]
    %v662 = vld [vmem:[%s654 + $0x38] sm:$0xff]
    %v663 = vld [vmem:[%s654 + $0x40] sm:$0xff]
    %v664 = vld [vmem:[%s654 + $0x48] sm:$0xff]
    %v665 = vld [vmem:[%s654 + $0x50] sm:$0xff]
    %v666 = vld [vmem:[%s654 + $0x58] sm:$0xff]
    %v667 = vld [vmem:[%s654 + $0x60] sm:$0xff]
    %v668 = vld [vmem:[%s654 + $0x68] sm:$0xff]
    %v669 = vld [vmem:[%s654 + $0x70] sm:$0xff]
    %v670 = vld [vmem:[%s654 + $0x78] sm:$0xff]
    %v671 = vld [vmem:[%s654 + $0x80] sm:$0xff]
    %v672 = vld [vmem:[%s654 + $0x88] sm:$0xff]
    %v673 = vld [vmem:[%s654 + $0x90] sm:$0xff]
    %v674 = vld [vmem:[%s654 + $0x98] sm:$0xff]
    %v675 = vld [vmem:[%s654 + $0xa0] sm:$0xff]
    %v676 = vld [vmem:[%s654 + $0xa8] sm:$0xff]
    %v677 = vld [vmem:[%s654 + $0xb0] sm:$0xff]
    %v678 = vld [vmem:[%s654 + $0xb8] sm:$0xff]
    %v679 = vld [vmem:[%s654 + $0xc0] sm:$0xff]
    %v680 = vld [vmem:[%s654 + $0xc8] sm:$0xff]
    %v681 = vld [vmem:[%s654 + $0xd0] sm:$0xff]
    %v682 = vld [vmem:[%s654 + $0xd8] sm:$0xff]
    %v683 = vld [vmem:[%s654 + $0xe0] sm:$0xff]
    %v684 = vld [vmem:[%s654 + $0xe8] sm:$0xff]
    %v685 = vld [vmem:[%s654 + $0xf0] sm:$0xff]
    %v686 = vld [vmem:[%s654 + $0xf8] sm:$0xff]
    %687 = vmatpush.msra.mxu0 %v670
    %688 = vmatpush.msra.mxu0 %v669
    %689 = vmatpush.msra.mxu0 %v668
    %690 = vmatpush.msra.mxu0 %v667
    %691 = vmatpush.msra.mxu0 %v666
    %692 = vmatpush.msra.mxu0 %v665
    %693 = vmatpush.msra.mxu0 %v664
    %694 = vmatpush.msra.mxu0 %v663
    %695 = vmatpush.msra.mxu0 %v662
    %696 = vmatpush.msra.mxu0 %v661
    %697 = vmatpush.msra.mxu0 %v660
    %698 = vmatpush.msra.mxu0 %v659
    %699 = vmatpush.msra.mxu0 %v658
    %700 = vmatpush.msra.mxu0 %v657
    %701 = vmatpush.msra.mxu0 %v656
    %702 = vmatpush.msra.mxu0 %v655
    %703 = vmatmul.f32.gmra.mxu0 %v652
    %v704 = vpop.f32.mrf.mxu0
    %v705 = vadd.f32 0.0, %v704
    %706 = vdwg.mxu0
    %707 = vmatpush.msra.mxu0 %v686
    %708 = vmatpush.msra.mxu0 %v685
    %709 = vmatpush.msra.mxu0 %v684
    %710 = vmatpush.msra.mxu0 %v683
    %711 = vmatpush.msra.mxu0 %v682
    %712 = vmatpush.msra.mxu0 %v681
    %713 = vmatpush.msra.mxu0 %v680
    %714 = vmatpush.msra.mxu0 %v679
    %715 = vmatpush.msra.mxu0 %v678
    %716 = vmatpush.msra.mxu0 %v677
    %717 = vmatpush.msra.mxu0 %v676
    %718 = vmatpush.msra.mxu0 %v675
    %719 = vmatpush.msra.mxu0 %v674
    %720 = vmatpush.msra.mxu0 %v673
    %721 = vmatpush.msra.mxu0 %v672
    %722 = vmatpush.msra.mxu0 %v671
    %723 = vmatmul.f32.gmra.mxu0 %v653
    %v724 = vpop.f32.mrf.mxu0
    %v725 = vadd.f32 %v705, %v724
    %726 = vdwg.mxu0
    %727 = vmatpush.msra.mxu0 %v374
    %728 = vmatpush.msra.mxu0 %v373
    %729 = vmatpush.msra.mxu0 %v372
    %730 = vmatpush.msra.mxu0 %v371
    %731 = vmatpush.msra.mxu0 %v370
    %732 = vmatpush.msra.mxu0 %v369
    %733 = vmatpush.msra.mxu0 %v368
    %734 = vmatpush.msra.mxu0 %v367
    %735 = vmatpush.msra.mxu0 %v366
    %736 = vmatpush.msra.mxu0 %v365
    %737 = vmatpush.msra.mxu0 %v364
    %738 = vmatpush.msra.mxu0 %v363
    %739 = vmatpush.msra.mxu0 %v362
    %740 = vmatpush.msra.mxu0 %v361
    %741 = vmatpush.msra.mxu0 %v360
    %742 = vmatpush.msra.mxu0 %v359
    %743 = vmatmul.f32.gmra.mxu0 %v357
    %v744 = vpop.f32.mrf.mxu0
    %v745 = vadd.f32 %v725, %v744
    %746 = vdwg.mxu0
    %747 = vmatpush.msra.mxu0 %v390
    %748 = vmatpush.msra.mxu0 %v389
    %749 = vmatpush.msra.mxu0 %v388
    %750 = vmatpush.msra.mxu0 %v387
    %751 = vmatpush.msra.mxu0 %v386
    %752 = vmatpush.msra.mxu0 %v385
    %753 = vmatpush.msra.mxu0 %v384
    %754 = vmatpush.msra.mxu0 %v383
    %755 = vmatpush.msra.mxu0 %v382
    %756 = vmatpush.msra.mxu0 %v381
    %757 = vmatpush.msra.mxu0 %v380
    %758 = vmatpush.msra.mxu0 %v379
    %759 = vmatpush.msra.mxu0 %v378
    %760 = vmatpush.msra.mxu0 %v377
    %761 = vmatpush.msra.mxu0 %v376
    %762 = vmatpush.msra.mxu0 %v375
    %763 = vmatmul.f32.gmra.mxu0 %v358
    %v764 = vpop.f32.mrf.mxu0
    %v765 = vadd.f32 %v745, %v764
    %766 = vdwg.mxu0
    %v767 = vld [vmem:[%s4] sm:$0x1]
    %v769 = vperm.slane %v767, 0
    %v771 = vadd.f32 %v765, %v769
    %772 = vst [vmem:[#allocation12] sm:$0xff] %v771
    // Predicated region
    $region52: #{tpu_custom_call.1} parent=1 // pred_check
      _
    $region53: #{tpu_custom_call.1} parent=1 // pred_check_branch
      %774 = sbr.rel (0) target = $region55
    $region54: #{tpu_custom_call.1} parent=1 // pred_region
      %776 = vsyncadd [#allocation5], 0
      %s778 = sshll.u32 [#allocation12], 4
      %s779 = int_to_ptr.vmem [resolvable:$true] %s778
      %s780 = sshll.u32 %s5, 4
      %s781 = int_to_ptr.hbm [resolvable:$true] %s780
      %783 = dma.vmem_to_hbm [thread:$0]  %s779, 128, %s781, [#allocation5]
    $region55: #{tpu_custom_call.1} parent=1 // pred_fallthru
      _
    // Predicated region
    $region56: #{tpu_custom_call.1} parent=1 // pred_check
      _
    $region57: #{tpu_custom_call.1} parent=1 // pred_check_branch
      %785 = sbr.rel (0) target = $region59
    $region58: #{tpu_custom_call.1} parent=1 // pred_region
      %787 = dma.done [#allocation5], 128
    $region59: #{tpu_custom_call.1} parent=1 // pred_fallthru
      _
    %788 = vsyncpa [#allocation4], 1
    %789 = vsyncpa [#allocation11], 1
    %790 = vsyncpa [#allocation5], 1
    %791 = vsyncpa [#allocation6], 1
    %792 = vsyncpa [#allocation7], 1

</llo_original>
